<compile_context>
chip_gen: v5e
topology: v5e:2x2
jax: 0.10.0
libtpu: 0.0.40
codegen_flags: <defaults>
</compile_context>

<pallas_src>
import functools

import jax
import jax.numpy as jnp
from jax import lax
from jax.experimental import pallas as pl
from jax.experimental.pallas import tpu as pltpu


def _head_kernel(x_ref, w_ref, b_ref, o_ref, *, act_func):
    """One batch tile: fused projection + bias + activation.

    x_ref: (tb, dim_in)      native dtype
    w_ref: (c_pad, dim_in)   native dtype, PyTorch nn.Linear layout (untransposed)
    b_ref: (1, c_pad)        native dtype
    o_ref: (tb, c_pad)
    """
    # MXU: contract dim_in of both operands (== x @ W.T), f32 accumulation.
    logits = lax.dot_general(
        x_ref[...], w_ref[...],
        dimension_numbers=(((1,), (1,)), ((), ())),
        preferred_element_type=jnp.float32,
    )
    logits = logits + b_ref[...].astype(jnp.float32)

    if act_func == "softmax":
        m = jnp.max(logits, axis=-1, keepdims=True)
        e = jnp.exp(logits - m)
        denom = jnp.sum(e, axis=-1, keepdims=True)
        out = e * pl.reciprocal(denom, approx=True)          # EUP, not VALU divide
    elif act_func == "sigmoid":
        out = pl.reciprocal(1.0 + jnp.exp(-logits), approx=True)
    else:  # "none": training-mode forward (activation skipped)
        out = logits

    o_ref[...] = out.astype(o_ref.dtype)


def transformer_basic_head(x, weight, bias, *, act_func="softmax",
                           training=False, block_b=256):
    """Pallas TPU forward of TransformerBasicHead.

    Args:
      x:      (B, dim_in) input features (f32 or bf16).
      weight: (num_classes, dim_in)  -- PyTorch nn.Linear layout, used as-is.
      bias:   (num_classes,)
      act_func: 'softmax' or 'sigmoid' (applied only when not training).
      training: if True, returns raw logits (matches PyTorch forward).
    Returns:
      (B, num_classes) array, same dtype as x.
    """
    # TODO(synk): training-mode dropout (dropout_rate > 0) is not implemented;
    # it is a no-op in eval mode (the only mode where the activation applies)
    # and whenever dropout_rate == 0.0.
    B, dim_in = x.shape
    num_classes, dim_in_w = weight.shape
    assert dim_in == dim_in_w, (dim_in, dim_in_w)
    assert bias.shape == (num_classes,), bias.shape
    if act_func not in ("softmax", "sigmoid"):
        raise NotImplementedError(f"{act_func} is not supported")

    act = "none" if training else act_func

    # Lane-dense output: pad the class dim to a multiple of 128.  Padded weight
    # rows are zero; padded bias is -1e30 for softmax (exp -> 0, denominator
    # untouched) and 0 otherwise (padded columns are sliced off below).
    c_pad = ((num_classes + 127) // 128) * 128
    pad = c_pad - num_classes
    w = jnp.asarray(weight)              # (num_classes, dim_in) -- NOT transposed
    b = jnp.asarray(bias)
    if pad:
        # NOTE: in a real model this padding is a one-time init transform.
        w = jnp.pad(w, ((0, pad), (0, 0)))
        b = jnp.pad(b, (0, pad),
                    constant_values=(-1e30 if act == "softmax" else 0.0))
    b2 = b.reshape(1, c_pad)

    # Batch tiling: whole batch per step when small, otherwise block_b rows
    # (multiple of 8 sublanes).  Weight / bias stay VMEM-resident.
    tb = B if B <= block_b else block_b
    grid = (pl.cdiv(B, tb),)

    def _nbytes(a):
        return a.size * jnp.dtype(a.dtype).itemsize

    cost = pl.CostEstimate(
        flops=2 * B * dim_in * c_pad,
        transcendentals=(B * c_pad) if act in ("softmax", "sigmoid") else 0,
        bytes_accessed=(_nbytes(x) + _nbytes(w) + _nbytes(b2)
                        + B * c_pad * jnp.dtype(x.dtype).itemsize),
    )

    kernel = functools.partial(_head_kernel, act_func=act)

    out = pl.pallas_call(
        kernel,
        out_shape=jax.ShapeDtypeStruct((B, c_pad), x.dtype),
        grid=grid,
        in_specs=[
            pl.BlockSpec((tb, dim_in), lambda i: (i, 0)),
            pl.BlockSpec((c_pad, dim_in), lambda i: (0, 0)),
            pl.BlockSpec((1, c_pad), lambda i: (0, 0)),
        ],
        out_specs=pl.BlockSpec((tb, c_pad), lambda i: (i, 0)),
        compiler_params=pltpu.CompilerParams(
            dimension_semantics=("parallel",)),
        cost_estimate=cost,
    )(x, w, b2)

    return out[:, :num_classes] if pad else out


if __name__ == "__main__":
    key = jax.random.PRNGKey(0)
    k1, k2, k3, k4, k5 = jax.random.split(key, 5)

    # --- Small head, non-128-multiple classes (exercises the lane-padding
    #     path): B=2, dim_in=32, num_classes=16, eval mode ---
    B, dim_in, num_classes = 2, 32, 16
    x = jax.random.normal(k1, (B, dim_in), dtype=jnp.float32)
    w = jax.random.normal(k2, (num_classes, dim_in), dtype=jnp.float32) * 0.02
    b = jax.random.normal(k3, (num_classes,), dtype=jnp.float32) * 0.02

    y = jax.block_until_ready(
        transformer_basic_head(x, w, b, act_func="softmax"))
    ref = jax.nn.softmax(x @ w.T + b, axis=-1)
    assert y.shape == (B, num_classes), (y.shape, ref.shape)
    assert jnp.allclose(y, ref, atol=1e-3, rtol=1e-2), "softmax head mismatch"

    y_sig = jax.block_until_ready(
        transformer_basic_head(x, w, b, act_func="sigmoid"))
    ref_sig = jax.nn.sigmoid(x @ w.T + b)
    assert jnp.allclose(y_sig, ref_sig, atol=1e-3, rtol=1e-2), "sigmoid head mismatch"

    # --- Training-mode forward returns raw logits (activation skipped) ---
    y_tr = jax.block_until_ready(
        transformer_basic_head(x, w, b, act_func="softmax", training=True))
    ref_tr = x @ w.T + b
    assert jnp.allclose(y_tr, ref_tr, atol=1e-3, rtol=1e-2), "training logits mismatch"

    # --- bf16 inputs fed straight to the MXU (no in-kernel upcast) ---
    xb, wb, bb = (x.astype(jnp.bfloat16), w.astype(jnp.bfloat16),
                  b.astype(jnp.bfloat16))
    y_bf = jax.block_until_ready(
        transformer_basic_head(xb, wb, bb, act_func="softmax"))
    ref_bf = jax.nn.softmax(
        xb.astype(jnp.float32) @ wb.astype(jnp.float32).T
        + bb.astype(jnp.float32), axis=-1)
    assert jnp.allclose(y_bf.astype(jnp.float32), ref_bf,
                        atol=2e-2, rtol=5e-2), "bf16 head mismatch"

    # --- Larger batch: exercises the batch-tiled path (grid=2 with tb=256,
    #     lane-dense 128-class output, both TCs usable on v7x) ---
    B2, d2, c2 = 512, 64, 128
    x2 = jax.random.normal(k4, (B2, d2), dtype=jnp.float32)
    w2 = jax.random.normal(k5, (c2, d2), dtype=jnp.float32) * 0.05
    b2 = jnp.zeros((c2,), dtype=jnp.float32)
    y2 = jax.block_until_ready(
        transformer_basic_head(x2, w2, b2, act_func="softmax"))
    ref2 = jax.nn.softmax(x2 @ w2.T + b2, axis=-1)
    assert jnp.allclose(y2, ref2, atol=1e-3, rtol=1e-2), "tiled head mismatch"

    print("KERNEL_OK")
</pallas_src>

<mosaic_0001>
module attributes {stable_mosaic.version = 11 : i64} {
  func.func @_head_kernel(%arg0: i32, %arg1: memref<2x32xf32, #tpu.memory_space<vmem>>, %arg2: memref<128x32xf32, #tpu.memory_space<vmem>>, %arg3: memref<1x128xf32, #tpu.memory_space<vmem>>, %arg4: memref<2x128xf32, #tpu.memory_space<vmem>>) attributes {dimension_semantics = [#tpu.dimension_semantics<parallel>], iteration_bounds = array<i64: 1>, scalar_prefetch = 0 : i64, scratch_operands = 0 : i64, tpu.core_type = #tpu.core_type<tc>, window_params = [{transform_indices = @transform_0, window_bounds = array<i64: 2, 32>}, {pipeline_mode = #tpu.pipeline_mode<synchronous>, transform_indices = @transform_1, window_bounds = array<i64: 128, 32>}, {pipeline_mode = #tpu.pipeline_mode<synchronous>, transform_indices = @transform_2, window_bounds = array<i64: 1, 128>}, {transform_indices = @transform_3, window_bounds = array<i64: 2, 128>}]} {
    %c0 = arith.constant 0 : index
    %c0_0 = arith.constant 0 : index
    %0 = vector.load %arg1[%c0, %c0_0] : memref<2x32xf32, #tpu.memory_space<vmem>>, vector<2x32xf32>
    %c0_1 = arith.constant 0 : index
    %c0_2 = arith.constant 0 : index
    %1 = vector.load %arg2[%c0_1, %c0_2] : memref<128x32xf32, #tpu.memory_space<vmem>>, vector<128x32xf32>
    %cst = arith.constant dense<0.000000e+00> : vector<2x128xf32>
    %2 = tpu.matmul %0, %1, %cst {dimension_numbers = #tpu.dot_dimension_numbers<[1], [1], [0], [0], [0, 0, 1, 0], [], []>} : vector<2x32xf32>, vector<128x32xf32>, vector<2x128xf32> -> vector<2x128xf32>
    %c0_3 = arith.constant 0 : index
    %c0_4 = arith.constant 0 : index
    %3 = vector.load %arg3[%c0_3, %c0_4] : memref<1x128xf32, #tpu.memory_space<vmem>>, vector<1x128xf32>
    %4 = vector.broadcast %3 : vector<1x128xf32> to vector<2x128xf32>
    %5 = arith.addf %2, %4 : vector<2x128xf32>
    %cst_5 = arith.constant dense<0xFF800000> : vector<2xf32>
    %6 = vector.multi_reduction <maximumf>, %5, %cst_5 [1] : vector<2x128xf32> to vector<2xf32>
    %7 = vector.shape_cast %6 : vector<2xf32> to vector<2x1xf32>
    %8 = vector.broadcast %7 : vector<2x1xf32> to vector<2x128xf32>
    %9 = arith.subf %5, %8 : vector<2x128xf32>
    %10 = math.exp %9 : vector<2x128xf32>
    %cst_6 = arith.constant dense<0.000000e+00> : vector<2xf32>
    %11 = vector.multi_reduction <add>, %10, %cst_6 [1] : vector<2x128xf32> to vector<2xf32>
    %12 = vector.shape_cast %11 : vector<2xf32> to vector<2x1xf32>
    %13 = tpu.reciprocal %12 {approx = true} : vector<2x1xf32> -> vector<2x1xf32>
    %14 = vector.broadcast %13 : vector<2x1xf32> to vector<2x128xf32>
    %15 = arith.mulf %10, %14 : vector<2x128xf32>
    %c0_7 = arith.constant 0 : index
    %c0_8 = arith.constant 0 : index
    %16 = vector.load %arg4[%c0_7, %c0_8] : memref<2x128xf32, #tpu.memory_space<vmem>>, vector<2x128xf32>
    tpu.vector_store %arg4[%c0_7, %c0_8], %15 {strides = array<i32>} : memref<2x128xf32, #tpu.memory_space<vmem>>, vector<2x128xf32>,
    return
  }
  func.func @transform_0(%arg0: i32) -> (i32, i32) {
    %c0_i32 = arith.constant 0 : i32
    %c0_i32_0 = arith.constant 0 : i32
    return %arg0, %c0_i32 : i32, i32
  }
  func.func @transform_1(%arg0: i32) -> (i32, i32) {
    %c0_i32 = arith.constant 0 : i32
    %c0_i32_0 = arith.constant 0 : i32
    %c0_i32_1 = arith.constant 0 : i32
    return %c0_i32, %c0_i32_0 : i32, i32
  }
  func.func @transform_2(%arg0: i32) -> (i32, i32) {
    %c0_i32 = arith.constant 0 : i32
    %c0_i32_0 = arith.constant 0 : i32
    %c0_i32_1 = arith.constant 0 : i32
    return %c0_i32, %c0_i32_0 : i32, i32
  }
  func.func @transform_3(%arg0: i32) -> (i32, i32) {
    %c0_i32 = arith.constant 0 : i32
    %c0_i32_0 = arith.constant 0 : i32
    return %arg0, %c0_i32 : i32, i32
  }
}

</mosaic_0001>

<llo_original>
// kernel: tpu_custom_call.1
$region0: #{tpu_custom_call.1}
  #allocation0 [shape = 'u32[]', space=smem, size = 0x4, offset = 0x4, fixed_abs, tag = 'smem constant byte address 0x4 - core index']
  #allocation1 [shape = 'u32[72,128]{1,0:T(1,128)}', space=vmem, size = 0x9000, scoped, tag = 'internal scratch']
  %s0 = inlined_call_operand.vmem [shape: f32[2,32], index: 0, kind: input, shape index: {}]
  %s1 = inlined_call_operand.vmem [shape: f32[128,32], index: 1, kind: input, shape index: {}]
  %s2 = inlined_call_operand.vmem [shape: f32[1,128], index: 2, kind: input, shape index: {}]
  %s3 = inlined_call_operand.hbm [shape: f32[2,128], index: 3, kind: output, shape index: {}]
  %s4 = sld [smem:[#allocation0]]
  $region22: #{tpu_custom_call.1} parent=0
    _
  %s6 = ssub.s32 1, %s4
  %s7 = scalar_select 0, %s6, %s4
  $region1: #{tpu_custom_call.1} parent=0
    #allocation2 [shape = 'u8[1024]{0}', space=vmem, size = 0x400, scoped, tag = 'output window, operand 0, single buffered']
    #allocation3 [shape = 's32[1]{0}', space=sflag, size = 0x4, scoped, tag = 'scoped memory for tpu_custom_call.1']
    %8 = vsyncpa [#allocation3], 0
    // Predicated region
    $region2: #{tpu_custom_call.1} parent=1 // pred_check
      _
    $region3: #{tpu_custom_call.1} parent=1 // pred_check_branch
      %10 = sbr.rel (0) target = $region5
    $region4: #{tpu_custom_call.1} parent=1 // pred_region
      _
    $region5: #{tpu_custom_call.1} parent=1 // pred_fallthru
      _
    // Predicated region
    $region6: #{tpu_custom_call.1} parent=1 // pred_check
      _
    $region7: #{tpu_custom_call.1} parent=1 // pred_check_branch
      %12 = sbr.rel (0) target = $region9
    $region8: #{tpu_custom_call.1} parent=1 // pred_region
      _
    $region9: #{tpu_custom_call.1} parent=1 // pred_fallthru
      _
    // Predicated region
    $region10: #{tpu_custom_call.1} parent=1 // pred_check
      _
    $region11: #{tpu_custom_call.1} parent=1 // pred_check_branch
      %14 = sbr.rel (0) target = $region13
    $region12: #{tpu_custom_call.1} parent=1 // pred_region
      _
    $region13: #{tpu_custom_call.1} parent=1 // pred_fallthru
      _
    %v15 = vld [vmem:[%s0] sm:$0x3]
    %v16 = vld [vmem:[%s1] sm:$0xff]
    %v17 = vld [vmem:[%s1 + $0x8] sm:$0xff]
    %v18 = vld [vmem:[%s1 + $0x10] sm:$0xff]
    %v19 = vld [vmem:[%s1 + $0x18] sm:$0xff]
    %v20 = vld [vmem:[%s1 + $0x20] sm:$0xff]
    %v21 = vld [vmem:[%s1 + $0x28] sm:$0xff]
    %v22 = vld [vmem:[%s1 + $0x30] sm:$0xff]
    %v23 = vld [vmem:[%s1 + $0x38] sm:$0xff]
    %v24 = vld [vmem:[%s1 + $0x40] sm:$0xff]
    %v25 = vld [vmem:[%s1 + $0x48] sm:$0xff]
    %v26 = vld [vmem:[%s1 + $0x50] sm:$0xff]
    %v27 = vld [vmem:[%s1 + $0x58] sm:$0xff]
    %v28 = vld [vmem:[%s1 + $0x60] sm:$0xff]
    %v29 = vld [vmem:[%s1 + $0x68] sm:$0xff]
    %v30 = vld [vmem:[%s1 + $0x70] sm:$0xff]
    %v31 = vld [vmem:[%s1 + $0x78] sm:$0xff]
    %v32 = vld [vmem:[%s2] sm:$0x1]
    %v34 = vperm.slane %v32, 0
    %vm36 = vcmask 261120
    %v38 = vsel %vm36, %v15, 0
    %v41 = vsel %vm36, %v16, 0
    %v44 = vsel %vm36, %v17, 0
    %v47 = vsel %vm36, %v18, 0
    %v50 = vsel %vm36, %v19, 0
    %v53 = vsel %vm36, %v20, 0
    %v56 = vsel %vm36, %v21, 0
    %v59 = vsel %vm36, %v22, 0
    %v62 = vsel %vm36, %v23, 0
    %v65 = vsel %vm36, %v24, 0
    %v68 = vsel %vm36, %v25, 0
    %v71 = vsel %vm36, %v26, 0
    %v74 = vsel %vm36, %v27, 0
    %v77 = vsel %vm36, %v28, 0
    %v80 = vsel %vm36, %v29, 0
    %v83 = vsel %vm36, %v30, 0
    %v86 = vsel %vm36, %v31, 0
    %88 = vmatpush.xpose.msra.mxu0 %v86
    %89 = vmatpush.xpose.msra.mxu0 %v83
    %90 = vmatpush.xpose.msra.mxu0 %v80
    %91 = vmatpush.xpose.msra.mxu0 %v77
    %92 = vmatpush.xpose.msra.mxu0 %v74
    %93 = vmatpush.xpose.msra.mxu0 %v71
    %94 = vmatpush.xpose.msra.mxu0 %v68
    %95 = vmatpush.xpose.msra.mxu0 %v65
    %96 = vmatpush.xpose.msra.mxu0 %v62
    %97 = vmatpush.xpose.msra.mxu0 %v59
    %98 = vmatpush.xpose.msra.mxu0 %v56
    %99 = vmatpush.xpose.msra.mxu0 %v53
    %100 = vmatpush.xpose.msra.mxu0 %v50
    %101 = vmatpush.xpose.msra.mxu0 %v47
    %102 = vmatpush.xpose.msra.mxu0 %v44
    %103 = vmatpush.xpose.msra.mxu0 %v41
    %104 = vmatmul.f32.gmra.mxu0 %v38
    %v105 = vpop.f32.mrf.mxu0
    %v106 = vadd.f32 %v34, %v105
    %107 = vdwg.mxu0
    %vm108 = vcmask 1041408
    %v109 = vsel %vm108, %v106, -inf
    %110 = vmax.xlane.f32.xlu0 %v109
    %v111 = vpop.xlane.xlu0 %110
    %v112 = vsub.f32 %v106, %v111
    %v113 = vmul.f32 %v112, 1.442695
    %v114 = vpow.pop %v113
    %v115 = vsel %vm108, %v114, 0.0
    %116 = vadd.xlane.f32.xlu0 %v115
    %v117 = vpop.xlane.xlu0 %116
    %v118 = vrcp.pop %v117
    %v119 = vmul.f32 %v114, %v118
    %120 = vst [vmem:[#allocation2] sm:$0x3] %v119
    // Predicated region
    $region14: #{tpu_custom_call.1} parent=1 // pred_check
      _
    $region15: #{tpu_custom_call.1} parent=1 // pred_check_branch
      %122 = sbr.rel (0) target = $region17
    $region16: #{tpu_custom_call.1} parent=1 // pred_region
      %124 = vsyncadd [#allocation3], 0
      %s126 = sshll.u32 [#allocation2], 4
      %s127 = int_to_ptr.vmem [resolvable:$true] %s126
      %s128 = sshll.u32 %s3, 4
      %s129 = int_to_ptr.hbm [resolvable:$true] %s128
      %131 = dma.vmem_to_hbm [thread:$0]  %s127, 32, %s129, [#allocation3]
    $region17: #{tpu_custom_call.1} parent=1 // pred_fallthru
      _
    // Predicated region
    $region18: #{tpu_custom_call.1} parent=1 // pred_check
      _
    $region19: #{tpu_custom_call.1} parent=1 // pred_check_branch
      %133 = sbr.rel (0) target = $region21
    $region20: #{tpu_custom_call.1} parent=1 // pred_region
      %135 = dma.done [#allocation3], 32
    $region21: #{tpu_custom_call.1} parent=1 // pred_fallthru
      _
    %136 = vsyncpa [#allocation3], 1

</llo_original>
